<compile_context>
chip_gen: v5e
topology: v5e:2x2
jax: 0.10.0
libtpu: 0.0.40
codegen_flags: <defaults>
</compile_context>

<pallas_src>
import functools

import jax
import jax.numpy as jnp
from jax.experimental import pallas as pl
from jax.experimental.pallas import tpu as pltpu


def _round_up(x, m):
    return ((x + m - 1) // m) * m


def _softplus(x):
    # numerically stable softplus = log(1 + exp(x))
    return jnp.logaddexp(x, jnp.zeros_like(x))


def _elu(x):
    # clamp the exp argument so the unselected branch never produces inf
    return jnp.where(x > 0, x, jnp.exp(jnp.minimum(x, 0.0)) - 1.0)


def encoder_kernel(x_ref, w1_ref, b1_ref, w2_ref, b2_ref, w3_ref, b3_ref,
                   out_ref, *, dim_z):
    # fc1: Linear(784, H) + ELU  (+ Dropout == identity in eval)
    h1 = jnp.dot(x_ref[...], w1_ref[...], preferred_element_type=jnp.float32)
    h1 = _elu(h1 + b1_ref[...])

    # fc2: Linear(H, H) + Tanh  (+ Dropout == identity in eval)
    h2 = jnp.dot(h1.astype(w2_ref.dtype), w2_ref[...],
                 preferred_element_type=jnp.float32)
    h2 = jnp.tanh(h2 + b2_ref[...])

    # output layer: Linear(H, 2*dim_z) (lane-padded to 128)
    g = jnp.dot(h2.astype(w3_ref.dtype), w3_ref[...],
                preferred_element_type=jnp.float32)
    g = g + b3_ref[...]

    # lane-dense epilogue: lanes [0, dim_z) carry the mean, the rest carry
    # 1e-6 + softplus(.) (padding lanes compute softplus(0) for free on the
    # EUP and are sliced off by the wrapper).
    lane = jax.lax.broadcasted_iota(jnp.int32, g.shape, dimension=1)
    out_ref[...] = jnp.where(lane < dim_z, g, 1e-6 + _softplus(g))


def gaussian_mlp_encoder(x, params, dim_z, *, mxu_dtype=jnp.float32):
    """Forward pass. Returns (mean, std), each [B, dim_z] float32."""
    w1, b1, w2, b2, w3, b3 = params
    B = x.shape[0]
    D_in = w1.shape[0]          # 784
    H = w1.shape[1]             # n_hidden
    D_out = w3.shape[1]         # 2 * dim_z

    # ---- host-side padding to aligned shapes -------------------------------
    D_in_pad = _round_up(D_in, 128)            # 784 -> 896
    H_pad = _round_up(H, 128)
    D_out_pad = _round_up(max(D_out, 128), 128)

    # Batch tiling: fill MXU rows; 256 rows per step when the batch allows it.
    TILE_B = 256 if B >= 256 else _round_up(B, 8)
    B_pad = _round_up(B, TILE_B)
    num_tiles = B_pad // TILE_B

    f32 = jnp.float32
    x_p = jnp.zeros((B_pad, D_in_pad), f32).at[:B, :D_in].set(
        x.astype(f32)).astype(mxu_dtype)
    w1_p = jnp.zeros((D_in_pad, H_pad), f32).at[:D_in, :H].set(
        w1.astype(f32)).astype(mxu_dtype)
    w2_p = jnp.zeros((H_pad, H_pad), f32).at[:H, :H].set(
        w2.astype(f32)).astype(mxu_dtype)
    w3_p = jnp.zeros((H_pad, D_out_pad), f32).at[:H, :D_out].set(
        w3.astype(f32)).astype(mxu_dtype)
    b1_p = jnp.zeros((1, H_pad), f32).at[:, :H].set(b1.reshape(1, H).astype(f32))
    b2_p = jnp.zeros((1, H_pad), f32).at[:, :H].set(b2.reshape(1, H).astype(f32))
    b3_p = jnp.zeros((1, D_out_pad), f32).at[:, :D_out].set(
        b3.reshape(1, D_out).astype(f32))

    # ---- VMEM budget (resident weights + double-buffered x/out tiles) ------
    esize = jnp.dtype(mxu_dtype).itemsize
    resident = (D_in_pad * H_pad + H_pad * H_pad + H_pad * D_out_pad) * esize \
               + (2 * H_pad + D_out_pad) * 4
    per_step = 2 * TILE_B * D_in_pad * esize + 2 * TILE_B * D_out_pad * 4
    scratch = 4 * TILE_B * H_pad * 4        # h1/h2 intermediates + slack
    vmem_limit = resident + per_step + scratch + (4 << 20)

    const2 = lambda i: (0, 0)               # weights/biases: VMEM-resident
    tile2 = lambda i: (i, 0)                # x / out: batch-tiled

    out = pl.pallas_call(
        functools.partial(encoder_kernel, dim_z=dim_z),
        out_shape=jax.ShapeDtypeStruct((B_pad, D_out_pad), jnp.float32),
        grid_spec=pltpu.PrefetchScalarGridSpec(
            num_scalar_prefetch=0,
            grid=(num_tiles,),
            in_specs=[
                pl.BlockSpec((TILE_B, D_in_pad), tile2),      # x
                pl.BlockSpec((D_in_pad, H_pad), const2),      # w1
                pl.BlockSpec((1, H_pad), const2),             # b1
                pl.BlockSpec((H_pad, H_pad), const2),         # w2
                pl.BlockSpec((1, H_pad), const2),             # b2
                pl.BlockSpec((H_pad, D_out_pad), const2),     # w3
                pl.BlockSpec((1, D_out_pad), const2),         # b3
            ],
            out_specs=pl.BlockSpec((TILE_B, D_out_pad), tile2),
        ),
        compiler_params=pltpu.CompilerParams(
            dimension_semantics=("parallel",),
            vmem_limit_bytes=int(vmem_limit),
        ),
    )(x_p, w1_p, b1_p, w2_p, b2_p, w3_p, b3_p)

    mean = out[:B, :dim_z]
    std = out[:B, dim_z:2 * dim_z]
    return mean, std


# --------------------------------------------------------------------------- #
# Parameter construction + pure-JAX reference
# --------------------------------------------------------------------------- #
def xavier_normal(key, fan_in, fan_out):
    std = (2.0 / (fan_in + fan_out)) ** 0.5
    return std * jax.random.normal(key, (fan_in, fan_out), dtype=jnp.float32)


def make_params(key, n_hidden, dim_z):
    k = jax.random.split(key, 6)
    d_in, d_out = 784, dim_z * 2
    w1 = xavier_normal(k[0], d_in, n_hidden)
    b1 = (1.0 / (d_in ** 0.5)) * jax.random.uniform(
        k[1], (1, n_hidden), minval=-1.0, maxval=1.0, dtype=jnp.float32)
    w2 = xavier_normal(k[2], n_hidden, n_hidden)
    b2 = (1.0 / (n_hidden ** 0.5)) * jax.random.uniform(
        k[3], (1, n_hidden), minval=-1.0, maxval=1.0, dtype=jnp.float32)
    w3 = xavier_normal(k[4], n_hidden, d_out)
    b3 = (1.0 / (n_hidden ** 0.5)) * jax.random.uniform(
        k[5], (1, d_out), minval=-1.0, maxval=1.0, dtype=jnp.float32)
    return (w1, b1, w2, b2, w3, b3)


def reference(x, params, dim_z):
    w1, b1, w2, b2, w3, b3 = params
    h1 = jax.nn.elu(x @ w1 + b1)
    h2 = jnp.tanh(h1 @ w2 + b2)
    g = h2 @ w3 + b3
    mean = g[:, :dim_z]
    std = 1e-6 + jax.nn.softplus(g[:, dim_z:])
    return mean, std


if __name__ == "__main__":
    B, n_hidden, dim_z = 8, 128, 2
    key = jax.random.PRNGKey(0)
    kx, kp = jax.random.split(key)
    x = jax.random.normal(kx, (B, 784), dtype=jnp.float32)
    params = make_params(kp, n_hidden, dim_z)

    mean, std = gaussian_mlp_encoder(x, params, dim_z)
    jax.block_until_ready((mean, std))

    ref_mean, ref_std = reference(x, params, dim_z)
    assert mean.shape == (B, dim_z) and std.shape == (B, dim_z)
    assert jnp.allclose(mean, ref_mean, atol=1e-4, rtol=1e-4)
    assert jnp.allclose(std, ref_std, atol=1e-4, rtol=1e-4)
    print("KERNEL_OK")
</pallas_src>

<mosaic_0001>
module attributes {stable_mosaic.version = 11 : i64} {
  func.func @encoder_kernel(%arg0: i32, %arg1: memref<8x896xf32, #tpu.memory_space<vmem>>, %arg2: memref<896x128xf32, #tpu.memory_space<vmem>>, %arg3: memref<1x128xf32, #tpu.memory_space<vmem>>, %arg4: memref<128x128xf32, #tpu.memory_space<vmem>>, %arg5: memref<1x128xf32, #tpu.memory_space<vmem>>, %arg6: memref<128x128xf32, #tpu.memory_space<vmem>>, %arg7: memref<1x128xf32, #tpu.memory_space<vmem>>, %arg8: memref<8x128xf32, #tpu.memory_space<vmem>>) attributes {dimension_semantics = [#tpu.dimension_semantics<parallel>], iteration_bounds = array<i64: 1>, scalar_prefetch = 0 : i64, scratch_operands = 0 : i64, tpu.core_type = #tpu.core_type<tc>, window_params = [{transform_indices = @transform_0, window_bounds = array<i64: 8, 896>}, {pipeline_mode = #tpu.pipeline_mode<synchronous>, transform_indices = @transform_1, window_bounds = array<i64: 896, 128>}, {pipeline_mode = #tpu.pipeline_mode<synchronous>, transform_indices = @transform_2, window_bounds = array<i64: 1, 128>}, {pipeline_mode = #tpu.pipeline_mode<synchronous>, transform_indices = @transform_3, window_bounds = array<i64: 128, 128>}, {pipeline_mode = #tpu.pipeline_mode<synchronous>, transform_indices = @transform_4, window_bounds = array<i64: 1, 128>}, {pipeline_mode = #tpu.pipeline_mode<synchronous>, transform_indices = @transform_5, window_bounds = array<i64: 128, 128>}, {pipeline_mode = #tpu.pipeline_mode<synchronous>, transform_indices = @transform_6, window_bounds = array<i64: 1, 128>}, {transform_indices = @transform_7, window_bounds = array<i64: 8, 128>}]} {
    %c0 = arith.constant 0 : index
    %c0_0 = arith.constant 0 : index
    %0 = vector.load %arg1[%c0, %c0_0] : memref<8x896xf32, #tpu.memory_space<vmem>>, vector<8x896xf32>
    %c0_1 = arith.constant 0 : index
    %c0_2 = arith.constant 0 : index
    %1 = vector.load %arg2[%c0_1, %c0_2] : memref<896x128xf32, #tpu.memory_space<vmem>>, vector<896x128xf32>
    %cst = arith.constant dense<0.000000e+00> : vector<8x128xf32>
    %2 = tpu.matmul %0, %1, %cst {dimension_numbers = #tpu.dot_dimension_numbers<[1], [0], [0], [1], [0, 0, 1, 1], [], []>} : vector<8x896xf32>, vector<896x128xf32>, vector<8x128xf32> -> vector<8x128xf32>
    %c0_3 = arith.constant 0 : index
    %c0_4 = arith.constant 0 : index
    %3 = vector.load %arg3[%c0_3, %c0_4] : memref<1x128xf32, #tpu.memory_space<vmem>>, vector<1x128xf32>
    %4 = vector.broadcast %3 : vector<1x128xf32> to vector<8x128xf32>
    %5 = arith.addf %2, %4 : vector<8x128xf32>
    %cst_5 = arith.constant 0.000000e+00 : f32
    %6 = vector.broadcast %cst_5 : f32 to vector<8x128xf32>
    %7 = arith.cmpf ogt, %5, %6 : vector<8x128xf32>
    %cst_6 = arith.constant 0.000000e+00 : f32
    %8 = vector.broadcast %cst_6 : f32 to vector<8x128xf32>
    %9 = arith.minimumf %5, %8 : vector<8x128xf32>
    %10 = math.exp %9 : vector<8x128xf32>
    %cst_7 = arith.constant 1.000000e+00 : f32
    %11 = vector.broadcast %cst_7 : f32 to vector<8x128xf32>
    %12 = arith.subf %10, %11 : vector<8x128xf32>
    %13 = arith.select %7, %5, %12 : vector<8x128xi1>, vector<8x128xf32>
    %c0_8 = arith.constant 0 : index
    %c0_9 = arith.constant 0 : index
    %14 = vector.load %arg4[%c0_8, %c0_9] : memref<128x128xf32, #tpu.memory_space<vmem>>, vector<128x128xf32>
    %cst_10 = arith.constant dense<0.000000e+00> : vector<8x128xf32>
    %15 = tpu.matmul %13, %14, %cst_10 {dimension_numbers = #tpu.dot_dimension_numbers<[1], [0], [0], [1], [0, 0, 1, 1], [], []>} : vector<8x128xf32>, vector<128x128xf32>, vector<8x128xf32> -> vector<8x128xf32>
    %c0_11 = arith.constant 0 : index
    %c0_12 = arith.constant 0 : index
    %16 = vector.load %arg5[%c0_11, %c0_12] : memref<1x128xf32, #tpu.memory_space<vmem>>, vector<1x128xf32>
    %17 = vector.broadcast %16 : vector<1x128xf32> to vector<8x128xf32>
    %18 = arith.addf %15, %17 : vector<8x128xf32>
    %19 = math.tanh %18 : vector<8x128xf32>
    %c0_13 = arith.constant 0 : index
    %c0_14 = arith.constant 0 : index
    %20 = vector.load %arg6[%c0_13, %c0_14] : memref<128x128xf32, #tpu.memory_space<vmem>>, vector<128x128xf32>
    %cst_15 = arith.constant dense<0.000000e+00> : vector<8x128xf32>
    %21 = tpu.matmul %19, %20, %cst_15 {dimension_numbers = #tpu.dot_dimension_numbers<[1], [0], [0], [1], [0, 0, 1, 1], [], []>} : vector<8x128xf32>, vector<128x128xf32>, vector<8x128xf32> -> vector<8x128xf32>
    %c0_16 = arith.constant 0 : index
    %c0_17 = arith.constant 0 : index
    %22 = vector.load %arg7[%c0_16, %c0_17] : memref<1x128xf32, #tpu.memory_space<vmem>>, vector<1x128xf32>
    %23 = vector.broadcast %22 : vector<1x128xf32> to vector<8x128xf32>
    %24 = arith.addf %21, %23 : vector<8x128xf32>
    %25 = tpu.iota {dimensions = array<i32: 1>} : vector<8x128xi32>
    %c2_i32 = arith.constant 2 : i32
    %26 = vector.broadcast %c2_i32 : i32 to vector<8x128xi32>
    %27 = arith.cmpi slt, %25, %26 : vector<8x128xi32>
    %cst_18 = arith.constant 0.000000e+00 : f32
    %28 = vector.broadcast %cst_18 : f32 to vector<8x128xf32>
    %29 = arith.maximumf %24, %28 : vector<8x128xf32>
    %30 = arith.subf %24, %28 : vector<8x128xf32>
    %31 = arith.cmpf one, %30, %30 : vector<8x128xf32>
    %32 = arith.addf %24, %28 : vector<8x128xf32>
    %33 = math.absf %30 : vector<8x128xf32>
    %cst_19 = arith.constant 0.000000e+00 : f32
    %34 = vector.broadcast %cst_19 : f32 to vector<8x128xf32>
    %35 = arith.subf %34, %33 : vector<8x128xf32>
    %36 = math.exp %35 : vector<8x128xf32>
    %37 = math.log1p %36 : vector<8x128xf32>
    %38 = arith.addf %29, %37 : vector<8x128xf32>
    %39 = arith.select %31, %32, %38 : vector<8x128xi1>, vector<8x128xf32>
    %cst_20 = arith.constant 9.99999997E-7 : f32
    %40 = vector.broadcast %cst_20 : f32 to vector<8x128xf32>
    %41 = arith.addf %40, %39 : vector<8x128xf32>
    %42 = arith.select %27, %24, %41 : vector<8x128xi1>, vector<8x128xf32>
    %c0_21 = arith.constant 0 : index
    %c0_22 = arith.constant 0 : index
    %43 = vector.load %arg8[%c0_21, %c0_22] : memref<8x128xf32, #tpu.memory_space<vmem>>, vector<8x128xf32>
    tpu.vector_store %arg8[%c0_21, %c0_22], %42 {strides = array<i32>} : memref<8x128xf32, #tpu.memory_space<vmem>>, vector<8x128xf32>,
    return
  }
  func.func @transform_0(%arg0: i32) -> (i32, i32) {
    %c0_i32 = arith.constant 0 : i32
    %c0_i32_0 = arith.constant 0 : i32
    return %arg0, %c0_i32 : i32, i32
  }
  func.func @transform_1(%arg0: i32) -> (i32, i32) {
    %c0_i32 = arith.constant 0 : i32
    %c0_i32_0 = arith.constant 0 : i32
    %c0_i32_1 = arith.constant 0 : i32
    return %c0_i32, %c0_i32_0 : i32, i32
  }
  func.func @transform_2(%arg0: i32) -> (i32, i32) {
    %c0_i32 = arith.constant 0 : i32
    %c0_i32_0 = arith.constant 0 : i32
    %c0_i32_1 = arith.constant 0 : i32
    return %c0_i32, %c0_i32_0 : i32, i32
  }
  func.func @transform_3(%arg0: i32) -> (i32, i32) {
    %c0_i32 = arith.constant 0 : i32
    %c0_i32_0 = arith.constant 0 : i32
    %c0_i32_1 = arith.constant 0 : i32
    return %c0_i32, %c0_i32_0 : i32, i32
  }
  func.func @transform_4(%arg0: i32) -> (i32, i32) {
    %c0_i32 = arith.constant 0 : i32
    %c0_i32_0 = arith.constant 0 : i32
    %c0_i32_1 = arith.constant 0 : i32
    return %c0_i32, %c0_i32_0 : i32, i32
  }
  func.func @transform_5(%arg0: i32) -> (i32, i32) {
    %c0_i32 = arith.constant 0 : i32
    %c0_i32_0 = arith.constant 0 : i32
    %c0_i32_1 = arith.constant 0 : i32
    return %c0_i32, %c0_i32_0 : i32, i32
  }
  func.func @transform_6(%arg0: i32) -> (i32, i32) {
    %c0_i32 = arith.constant 0 : i32
    %c0_i32_0 = arith.constant 0 : i32
    %c0_i32_1 = arith.constant 0 : i32
    return %c0_i32, %c0_i32_0 : i32, i32
  }
  func.func @transform_7(%arg0: i32) -> (i32, i32) {
    %c0_i32 = arith.constant 0 : i32
    %c0_i32_0 = arith.constant 0 : i32
    return %arg0, %c0_i32 : i32, i32
  }
}

</mosaic_0001>

<llo_original>
// kernel: tpu_custom_call.1
$region0: #{tpu_custom_call.1}
  #allocation0 [shape = 'u32[]', space=smem, size = 0x4, offset = 0x4, fixed_abs, tag = 'smem constant byte address 0x4 - core index']
  #allocation1 [shape = 'u32[72,128]{1,0:T(1,128)}', space=vmem, size = 0x9000, scoped, tag = 'internal scratch']
  %s0 = inlined_call_operand.hbm [shape: f32[8,896], index: 0, kind: input, shape index: {}]
  %s1 = inlined_call_operand.hbm [shape: f32[896,128], index: 1, kind: input, shape index: {}]
  %s2 = inlined_call_operand.vmem [shape: f32[1,128], index: 2, kind: input, shape index: {}]
  %s3 = inlined_call_operand.hbm [shape: f32[128,128], index: 3, kind: input, shape index: {}]
  %s4 = inlined_call_operand.vmem [shape: f32[1,128], index: 4, kind: input, shape index: {}]
  %s5 = inlined_call_operand.hbm [shape: f32[128,128], index: 5, kind: input, shape index: {}]
  %s6 = inlined_call_operand.vmem [shape: f32[1,128], index: 6, kind: input, shape index: {}]
  %s7 = inlined_call_operand.hbm [shape: f32[8,128], index: 7, kind: output, shape index: {}]
  %s8 = sld [smem:[#allocation0]]
  $region54: #{tpu_custom_call.1} parent=0
    _
  %s10 = ssub.s32 1, %s8
  %s11 = scalar_select 0, %s10, %s8
  $region1: #{tpu_custom_call.1} parent=0
    #allocation2 [shape = 'u8[28672]{0}', space=vmem, size = 0x7000, scoped, tag = 'input window, operand 0, single buffered']
    #allocation3 [shape = 's32[1]{0}', space=sflag, size = 0x4, scoped, tag = 'scoped memory for tpu_custom_call.1']
    #allocation4 [shape = 's32[1]{0}', space=sflag, size = 0x4, scoped, tag = 'scoped memory for tpu_custom_call.1']
    #allocation5 [shape = 'u8[458752]{0}', space=vmem, size = 0x70000, scoped, tag = 'input window, operand 1, single buffered']
    #allocation6 [shape = 's32[1]{0}', space=sflag, size = 0x4, scoped, tag = 'scoped memory for tpu_custom_call.1']
    #allocation7 [shape = 'u8[65536]{0}', space=vmem, size = 0x10000, scoped, tag = 'input window, operand 3, single buffered']
    #allocation8 [shape = 'u8[65536]{0}', space=vmem, size = 0x10000, scoped, tag = 'input window, operand 5, single buffered']
    #allocation9 [shape = 's32[1]{0}', space=sflag, size = 0x4, scoped, tag = 'scoped memory for tpu_custom_call.1']
    #allocation10 [shape = 'u8[4096]{0}', space=vmem, size = 0x1000, scoped, tag = 'output window, operand 0, single buffered']
    %12 = vsyncpa [#allocation3], 0
    %13 = vsyncpa [#allocation6], 0
    %14 = vsyncpa [#allocation9], 0
    %15 = vsyncpa [#allocation4], 0
    // Predicated region
    $region2: #{tpu_custom_call.1} parent=1 // pred_check
      _
    $region3: #{tpu_custom_call.1} parent=1 // pred_check_branch
      %17 = sbr.rel (0) target = $region5
    $region4: #{tpu_custom_call.1} parent=1 // pred_region
      %19 = vsyncadd [#allocation3], 0
      %s21 = sshll.u32 %s0, 4
      %s22 = int_to_ptr.hbm [resolvable:$true] %s21
      %s23 = sshll.u32 [#allocation2], 4
      %s24 = int_to_ptr.vmem [resolvable:$true] %s23
      %26 = dma.hbm_to_vmem [thread:$0]  %s22, 896, %s24, [#allocation3]
    $region5: #{tpu_custom_call.1} parent=1 // pred_fallthru
      _
    // Predicated region
    $region6: #{tpu_custom_call.1} parent=1 // pred_check
      _
    $region7: #{tpu_custom_call.1} parent=1 // pred_check_branch
      %28 = sbr.rel (0) target = $region9
    $region8: #{tpu_custom_call.1} parent=1 // pred_region
      %30 = vsyncadd [#allocation6], 0
      %s31 = sshll.u32 %s1, 4
      %s32 = int_to_ptr.hbm [resolvable:$true] %s31
      %s33 = sshll.u32 [#allocation5], 4
      %s34 = int_to_ptr.vmem [resolvable:$true] %s33
      %39 = dma.hbm_to_vmem [thread:$0]  %s32, 14336, %s34, [#allocation6], 128, 128, 8
    $region9: #{tpu_custom_call.1} parent=1 // pred_fallthru
      _
    // Predicated region
    $region10: #{tpu_custom_call.1} parent=1 // pred_check
      _
    $region11: #{tpu_custom_call.1} parent=1 // pred_check_branch
      %41 = sbr.rel (0) target = $region13
    $region12: #{tpu_custom_call.1} parent=1 // pred_region
      _
    $region13: #{tpu_custom_call.1} parent=1 // pred_fallthru
      _
    // Predicated region
    $region14: #{tpu_custom_call.1} parent=1 // pred_check
      _
    $region15: #{tpu_custom_call.1} parent=1 // pred_check_branch
      %43 = sbr.rel (0) target = $region17
    $region16: #{tpu_custom_call.1} parent=1 // pred_region
      %45 = vsyncadd [#allocation6], 0
      %s46 = sshll.u32 %s3, 4
      %s47 = int_to_ptr.hbm [resolvable:$true] %s46
      %s48 = sshll.u32 [#allocation7], 4
      %s49 = int_to_ptr.vmem [resolvable:$true] %s48
      %54 = dma.hbm_to_vmem [thread:$0]  %s47, 2048, %s49, [#allocation6], 128, 128, 8
    $region17: #{tpu_custom_call.1} parent=1 // pred_fallthru
      _
    // Predicated region
    $region18: #{tpu_custom_call.1} parent=1 // pred_check
      _
    $region19: #{tpu_custom_call.1} parent=1 // pred_check_branch
      %56 = sbr.rel (0) target = $region21
    $region20: #{tpu_custom_call.1} parent=1 // pred_region
      _
    $region21: #{tpu_custom_call.1} parent=1 // pred_fallthru
      _
    // Predicated region
    $region22: #{tpu_custom_call.1} parent=1 // pred_check
      _
    $region23: #{tpu_custom_call.1} parent=1 // pred_check_branch
      %58 = sbr.rel (0) target = $region25
    $region24: #{tpu_custom_call.1} parent=1 // pred_region
      %60 = vsyncadd [#allocation9], 0
      %s61 = sshll.u32 %s5, 4
      %s62 = int_to_ptr.hbm [resolvable:$true] %s61
      %s63 = sshll.u32 [#allocation8], 4
      %s64 = int_to_ptr.vmem [resolvable:$true] %s63
      %69 = dma.hbm_to_vmem [thread:$0]  %s62, 2048, %s64, [#allocation9], 128, 128, 8
    $region25: #{tpu_custom_call.1} parent=1 // pred_fallthru
      _
    // Predicated region
    $region26: #{tpu_custom_call.1} parent=1 // pred_check
      _
    $region27: #{tpu_custom_call.1} parent=1 // pred_check_branch
      %71 = sbr.rel (0) target = $region29
    $region28: #{tpu_custom_call.1} parent=1 // pred_region
      _
    $region29: #{tpu_custom_call.1} parent=1 // pred_fallthru
      _
    // Predicated region
    $region30: #{tpu_custom_call.1} parent=1 // pred_check
      _
    $region31: #{tpu_custom_call.1} parent=1 // pred_check_branch
      %73 = sbr.rel (0) target = $region33
    $region32: #{tpu_custom_call.1} parent=1 // pred_region
      %75 = dma.done [#allocation3], 896
    $region33: #{tpu_custom_call.1} parent=1 // pred_fallthru
      _
    // Predicated region
    $region34: #{tpu_custom_call.1} parent=1 // pred_check
      _
    $region35: #{tpu_custom_call.1} parent=1 // pred_check_branch
      %77 = sbr.rel (0) target = $region37
    $region36: #{tpu_custom_call.1} parent=1 // pred_region
      %79 = dma.done [#allocation6], 14336
    $region37: #{tpu_custom_call.1} parent=1 // pred_fallthru
      _
    // Predicated region
    $region38: #{tpu_custom_call.1} parent=1 // pred_check
      _
    $region39: #{tpu_custom_call.1} parent=1 // pred_check_branch
      %81 = sbr.rel (0) target = $region41
    $region40: #{tpu_custom_call.1} parent=1 // pred_region
      %83 = dma.done [#allocation6], 2048
    $region41: #{tpu_custom_call.1} parent=1 // pred_fallthru
      _
    // Predicated region
    $region42: #{tpu_custom_call.1} parent=1 // pred_check
      _
    $region43: #{tpu_custom_call.1} parent=1 // pred_check_branch
      %85 = sbr.rel (0) target = $region45
    $region44: #{tpu_custom_call.1} parent=1 // pred_region
      %87 = dma.done [#allocation9], 2048
    $region45: #{tpu_custom_call.1} parent=1 // pred_fallthru
      _
    %v88 = vld [vmem:[#allocation2] sm:$0xff]
    %v89 = vld [vmem:[#allocation2 + $0x8] sm:$0xff]
    %v90 = vld [vmem:[#allocation2 + $0x10] sm:$0xff]
    %v91 = vld [vmem:[#allocation2 + $0x18] sm:$0xff]
    %v92 = vld [vmem:[#allocation2 + $0x20] sm:$0xff]
    %v93 = vld [vmem:[#allocation2 + $0x28] sm:$0xff]
    %v94 = vld [vmem:[#allocation2 + $0x30] sm:$0xff]
    %v95 = vld [vmem:[#allocation5] sm:$0xff]
    %v96 = vld [vmem:[#allocation5 + $0x8] sm:$0xff]
    %v97 = vld [vmem:[#allocation5 + $0x10] sm:$0xff]
    %v98 = vld [vmem:[#allocation5 + $0x18] sm:$0xff]
    %v99 = vld [vmem:[#allocation5 + $0x20] sm:$0xff]
    %v100 = vld [vmem:[#allocation5 + $0x28] sm:$0xff]
    %v101 = vld [vmem:[#allocation5 + $0x30] sm:$0xff]
    %v102 = vld [vmem:[#allocation5 + $0x38] sm:$0xff]
    %v103 = vld [vmem:[#allocation5 + $0x40] sm:$0xff]
    %v104 = vld [vmem:[#allocation5 + $0x48] sm:$0xff]
    %v105 = vld [vmem:[#allocation5 + $0x50] sm:$0xff]
    %v106 = vld [vmem:[#allocation5 + $0x58] sm:$0xff]
    %v107 = vld [vmem:[#allocation5 + $0x60] sm:$0xff]
    %v108 = vld [vmem:[#allocation5 + $0x68] sm:$0xff]
    %v109 = vld [vmem:[#allocation5 + $0x70] sm:$0xff]
    %v110 = vld [vmem:[#allocation5 + $0x78] sm:$0xff]
    %v111 = vld [vmem:[#allocation5 + $0x80] sm:$0xff]
    %v112 = vld [vmem:[#allocation5 + $0x88] sm:$0xff]
    %v113 = vld [vmem:[#allocation5 + $0x90] sm:$0xff]
    %v114 = vld [vmem:[#allocation5 + $0x98] sm:$0xff]
    %v115 = vld [vmem:[#allocation5 + $0xa0] sm:$0xff]
    %v116 = vld [vmem:[#allocation5 + $0xa8] sm:$0xff]
    %v117 = vld [vmem:[#allocation5 + $0xb0] sm:$0xff]
    %v118 = vld [vmem:[#allocation5 + $0xb8] sm:$0xff]
    %v119 = vld [vmem:[#allocation5 + $0xc0] sm:$0xff]
    %v120 = vld [vmem:[#allocation5 + $0xc8] sm:$0xff]
    %v121 = vld [vmem:[#allocation5 + $0xd0] sm:$0xff]
    %v122 = vld [vmem:[#allocation5 + $0xd8] sm:$0xff]
    %v123 = vld [vmem:[#allocation5 + $0xe0] sm:$0xff]
    %v124 = vld [vmem:[#allocation5 + $0xe8] sm:$0xff]
    %v125 = vld [vmem:[#allocation5 + $0xf0] sm:$0xff]
    %v126 = vld [vmem:[#allocation5 + $0xf8] sm:$0xff]
    %v127 = vld [vmem:[#allocation5 + $0x100] sm:$0xff]
    %v128 = vld [vmem:[#allocation5 + $0x108] sm:$0xff]
    %v129 = vld [vmem:[#allocation5 + $0x110] sm:$0xff]
    %v130 = vld [vmem:[#allocation5 + $0x118] sm:$0xff]
    %v131 = vld [vmem:[#allocation5 + $0x120] sm:$0xff]
    %v132 = vld [vmem:[#allocation5 + $0x128] sm:$0xff]
    %v133 = vld [vmem:[#allocation5 + $0x130] sm:$0xff]
    %v134 = vld [vmem:[#allocation5 + $0x138] sm:$0xff]
    %v135 = vld [vmem:[#allocation5 + $0x140] sm:$0xff]
    %v136 = vld [vmem:[#allocation5 + $0x148] sm:$0xff]
    %v137 = vld [vmem:[#allocation5 + $0x150] sm:$0xff]
    %v138 = vld [vmem:[#allocation5 + $0x158] sm:$0xff]
    %v139 = vld [vmem:[#allocation5 + $0x160] sm:$0xff]
    %v140 = vld [vmem:[#allocation5 + $0x168] sm:$0xff]
    %v141 = vld [vmem:[#allocation5 + $0x170] sm:$0xff]
    %v142 = vld [vmem:[#allocation5 + $0x178] sm:$0xff]
    %v143 = vld [vmem:[#allocation5 + $0x180] sm:$0xff]
    %v144 = vld [vmem:[#allocation5 + $0x188] sm:$0xff]
    %v145 = vld [vmem:[#allocation5 + $0x190] sm:$0xff]
    %v146 = vld [vmem:[#allocation5 + $0x198] sm:$0xff]
    %v147 = vld [vmem:[#allocation5 + $0x1a0] sm:$0xff]
    %v148 = vld [vmem:[#allocation5 + $0x1a8] sm:$0xff]
    %v149 = vld [vmem:[#allocation5 + $0x1b0] sm:$0xff]
    %v150 = vld [vmem:[#allocation5 + $0x1b8] sm:$0xff]
    %v151 = vld [vmem:[#allocation5 + $0x1c0] sm:$0xff]
    %v152 = vld [vmem:[#allocation5 + $0x1c8] sm:$0xff]
    %v153 = vld [vmem:[#allocation5 + $0x1d0] sm:$0xff]
    %v154 = vld [vmem:[#allocation5 + $0x1d8] sm:$0xff]
    %v155 = vld [vmem:[#allocation5 + $0x1e0] sm:$0xff]
    %v156 = vld [vmem:[#allocation5 + $0x1e8] sm:$0xff]
    %v157 = vld [vmem:[#allocation5 + $0x1f0] sm:$0xff]
    %v158 = vld [vmem:[#allocation5 + $0x1f8] sm:$0xff]
    %v159 = vld [vmem:[#allocation5 + $0x200] sm:$0xff]
    %v160 = vld [vmem:[#allocation5 + $0x208] sm:$0xff]
    %v161 = vld [vmem:[#allocation5 + $0x210] sm:$0xff]
    %v162 = vld [vmem:[#allocation5 + $0x218] sm:$0xff]
    %v163 = vld [vmem:[#allocation5 + $0x220] sm:$0xff]
    %v164 = vld [vmem:[#allocation5 + $0x228] sm:$0xff]
    %v165 = vld [vmem:[#allocation5 + $0x230] sm:$0xff]
    %v166 = vld [vmem:[#allocation5 + $0x238] sm:$0xff]
    %v167 = vld [vmem:[#allocation5 + $0x240] sm:$0xff]
    %v168 = vld [vmem:[#allocation5 + $0x248] sm:$0xff]
    %v169 = vld [vmem:[#allocation5 + $0x250] sm:$0xff]
    %v170 = vld [vmem:[#allocation5 + $0x258] sm:$0xff]
    %v171 = vld [vmem:[#allocation5 + $0x260] sm:$0xff]
    %v172 = vld [vmem:[#allocation5 + $0x268] sm:$0xff]
    %v173 = vld [vmem:[#allocation5 + $0x270] sm:$0xff]
    %v174 = vld [vmem:[#allocation5 + $0x278] sm:$0xff]
    %v175 = vld [vmem:[#allocation5 + $0x280] sm:$0xff]
    %v176 = vld [vmem:[#allocation5 + $0x288] sm:$0xff]
    %v177 = vld [vmem:[#allocation5 + $0x290] sm:$0xff]
    %v178 = vld [vmem:[#allocation5 + $0x298] sm:$0xff]
    %v179 = vld [vmem:[#allocation5 + $0x2a0] sm:$0xff]
    %v180 = vld [vmem:[#allocation5 + $0x2a8] sm:$0xff]
    %v181 = vld [vmem:[#allocation5 + $0x2b0] sm:$0xff]
    %v182 = vld [vmem:[#allocation5 + $0x2b8] sm:$0xff]
    %v183 = vld [vmem:[#allocation5 + $0x2c0] sm:$0xff]
    %v184 = vld [vmem:[#allocation5 + $0x2c8] sm:$0xff]
    %v185 = vld [vmem:[#allocation5 + $0x2d0] sm:$0xff]
    %v186 = vld [vmem:[#allocation5 + $0x2d8] sm:$0xff]
    %v187 = vld [vmem:[#allocation5 + $0x2e0] sm:$0xff]
    %v188 = vld [vmem:[#allocation5 + $0x2e8] sm:$0xff]
    %v189 = vld [vmem:[#allocation5 + $0x2f0] sm:$0xff]
    %v190 = vld [vmem:[#allocation5 + $0x2f8] sm:$0xff]
    %v191 = vld [vmem:[#allocation5 + $0x300] sm:$0xff]
    %v192 = vld [vmem:[#allocation5 + $0x308] sm:$0xff]
    %v193 = vld [vmem:[#allocation5 + $0x310] sm:$0xff]
    %v194 = vld [vmem:[#allocation5 + $0x318] sm:$0xff]
    %v195 = vld [vmem:[#allocation5 + $0x320] sm:$0xff]
    %v196 = vld [vmem:[#allocation5 + $0x328] sm:$0xff]
    %v197 = vld [vmem:[#allocation5 + $0x330] sm:$0xff]
    %v198 = vld [vmem:[#allocation5 + $0x338] sm:$0xff]
    %v199 = vld [vmem:[#allocation5 + $0x340] sm:$0xff]
    %v200 = vld [vmem:[#allocation5 + $0x348] sm:$0xff]
    %v201 = vld [vmem:[#allocation5 + $0x350] sm:$0xff]
    %v202 = vld [vmem:[#allocation5 + $0x358] sm:$0xff]
    %v203 = vld [vmem:[#allocation5 + $0x360] sm:$0xff]
    %v204 = vld [vmem:[#allocation5 + $0x368] sm:$0xff]
    %v205 = vld [vmem:[#allocation5 + $0x370] sm:$0xff]
    %v206 = vld [vmem:[#allocation5 + $0x378] sm:$0xff]
    %v207 = vld [vmem:[%s2] sm:$0x1]
    %v209 = vperm.slane %v207, 0
    %211 = vmatpush.msra.mxu0 %v110
    %212 = vmatpush.msra.mxu0 %v109
    %213 = vmatpush.msra.mxu0 %v108
    %214 = vmatpush.msra.mxu0 %v107
    %215 = vmatpush.msra.mxu0 %v106
    %216 = vmatpush.msra.mxu0 %v105
    %217 = vmatpush.msra.mxu0 %v104
    %218 = vmatpush.msra.mxu0 %v103
    %219 = vmatpush.msra.mxu0 %v102
    %220 = vmatpush.msra.mxu0 %v101
    %221 = vmatpush.msra.mxu0 %v100
    %222 = vmatpush.msra.mxu0 %v99
    %223 = vmatpush.msra.mxu0 %v98
    %224 = vmatpush.msra.mxu0 %v97
    %225 = vmatpush.msra.mxu0 %v96
    %226 = vmatpush.msra.mxu0 %v95
    %227 = vmatmul.f32.gmra.mxu0 %v88
    %v228 = vpop.f32.mrf.mxu0
    %v229 = vadd.f32 %v209, %v228
    %230 = vdwg.mxu0
    %231 = vmatpush.msra.mxu0 %v126
    %232 = vmatpush.msra.mxu0 %v125
    %233 = vmatpush.msra.mxu0 %v124
    %234 = vmatpush.msra.mxu0 %v123
    %235 = vmatpush.msra.mxu0 %v122
    %236 = vmatpush.msra.mxu0 %v121
    %237 = vmatpush.msra.mxu0 %v120
    %238 = vmatpush.msra.mxu0 %v119
    %239 = vmatpush.msra.mxu0 %v118
    %240 = vmatpush.msra.mxu0 %v117
    %241 = vmatpush.msra.mxu0 %v116
    %242 = vmatpush.msra.mxu0 %v115
    %243 = vmatpush.msra.mxu0 %v114
    %244 = vmatpush.msra.mxu0 %v113
    %245 = vmatpush.msra.mxu0 %v112
    %246 = vmatpush.msra.mxu0 %v111
    %247 = vmatmul.f32.gmra.mxu0 %v89
    %v248 = vpop.f32.mrf.mxu0
    %v249 = vadd.f32 %v229, %v248
    %250 = vdwg.mxu0
    %251 = vmatpush.msra.mxu0 %v142
    %252 = vmatpush.msra.mxu0 %v141
    %253 = vmatpush.msra.mxu0 %v140
    %254 = vmatpush.msra.mxu0 %v139
    %255 = vmatpush.msra.mxu0 %v138
    %256 = vmatpush.msra.mxu0 %v137
    %257 = vmatpush.msra.mxu0 %v136
    %258 = vmatpush.msra.mxu0 %v135
    %259 = vmatpush.msra.mxu0 %v134
    %260 = vmatpush.msra.mxu0 %v133
    %261 = vmatpush.msra.mxu0 %v132
    %262 = vmatpush.msra.mxu0 %v131
    %263 = vmatpush.msra.mxu0 %v130
    %264 = vmatpush.msra.mxu0 %v129
    %265 = vmatpush.msra.mxu0 %v128
    %266 = vmatpush.msra.mxu0 %v127
    %267 = vmatmul.f32.gmra.mxu0 %v90
    %v268 = vpop.f32.mrf.mxu0
    %v269 = vadd.f32 %v249, %v268
    %270 = vdwg.mxu0
    %271 = vmatpush.msra.mxu0 %v158
    %272 = vmatpush.msra.mxu0 %v157
    %273 = vmatpush.msra.mxu0 %v156
    %274 = vmatpush.msra.mxu0 %v155
    %275 = vmatpush.msra.mxu0 %v154
    %276 = vmatpush.msra.mxu0 %v153
    %277 = vmatpush.msra.mxu0 %v152
    %278 = vmatpush.msra.mxu0 %v151
    %279 = vmatpush.msra.mxu0 %v150
    %280 = vmatpush.msra.mxu0 %v149
    %281 = vmatpush.msra.mxu0 %v148
    %282 = vmatpush.msra.mxu0 %v147
    %283 = vmatpush.msra.mxu0 %v146
    %284 = vmatpush.msra.mxu0 %v145
    %285 = vmatpush.msra.mxu0 %v144
    %286 = vmatpush.msra.mxu0 %v143
    %287 = vmatmul.f32.gmra.mxu0 %v91
    %v288 = vpop.f32.mrf.mxu0
    %v289 = vadd.f32 %v269, %v288
    %290 = vdwg.mxu0
    %291 = vmatpush.msra.mxu0 %v174
    %292 = vmatpush.msra.mxu0 %v173
    %293 = vmatpush.msra.mxu0 %v172
    %294 = vmatpush.msra.mxu0 %v171
    %295 = vmatpush.msra.mxu0 %v170
    %296 = vmatpush.msra.mxu0 %v169
    %297 = vmatpush.msra.mxu0 %v168
    %298 = vmatpush.msra.mxu0 %v167
    %299 = vmatpush.msra.mxu0 %v166
    %300 = vmatpush.msra.mxu0 %v165
    %301 = vmatpush.msra.mxu0 %v164
    %302 = vmatpush.msra.mxu0 %v163
    %303 = vmatpush.msra.mxu0 %v162
    %304 = vmatpush.msra.mxu0 %v161
    %305 = vmatpush.msra.mxu0 %v160
    %306 = vmatpush.msra.mxu0 %v159
    %307 = vmatmul.f32.gmra.mxu0 %v92
    %v308 = vpop.f32.mrf.mxu0
    %v309 = vadd.f32 %v289, %v308
    %310 = vdwg.mxu0
    %311 = vmatpush.msra.mxu0 %v190
    %312 = vmatpush.msra.mxu0 %v189
    %313 = vmatpush.msra.mxu0 %v188
    %314 = vmatpush.msra.mxu0 %v187
    %315 = vmatpush.msra.mxu0 %v186
    %316 = vmatpush.msra.mxu0 %v185
    %317 = vmatpush.msra.mxu0 %v184
    %318 = vmatpush.msra.mxu0 %v183
    %319 = vmatpush.msra.mxu0 %v182
    %320 = vmatpush.msra.mxu0 %v181
    %321 = vmatpush.msra.mxu0 %v180
    %322 = vmatpush.msra.mxu0 %v179
    %323 = vmatpush.msra.mxu0 %v178
    %324 = vmatpush.msra.mxu0 %v177
    %325 = vmatpush.msra.mxu0 %v176
    %326 = vmatpush.msra.mxu0 %v175
    %327 = vmatmul.f32.gmra.mxu0 %v93
    %v328 = vpop.f32.mrf.mxu0
    %v329 = vadd.f32 %v309, %v328
    %330 = vdwg.mxu0
    %331 = vmatpush.msra.mxu0 %v206
    %332 = vmatpush.msra.mxu0 %v205
    %333 = vmatpush.msra.mxu0 %v204
    %334 = vmatpush.msra.mxu0 %v203
    %335 = vmatpush.msra.mxu0 %v202
    %336 = vmatpush.msra.mxu0 %v201
    %337 = vmatpush.msra.mxu0 %v200
    %338 = vmatpush.msra.mxu0 %v199
    %339 = vmatpush.msra.mxu0 %v198
    %340 = vmatpush.msra.mxu0 %v197
    %341 = vmatpush.msra.mxu0 %v196
    %342 = vmatpush.msra.mxu0 %v195
    %343 = vmatpush.msra.mxu0 %v194
    %344 = vmatpush.msra.mxu0 %v193
    %345 = vmatpush.msra.mxu0 %v192
    %346 = vmatpush.msra.mxu0 %v191
    %347 = vmatmul.f32.gmra.mxu0 %v94
    %v348 = vpop.f32.mrf.mxu0
    %v349 = vadd.f32 %v329, %v348
    %350 = vdwg.mxu0
    %vm351 = vcmp.gt.f32.partialorder %v349, 0.0
    %v352 = vmin.f32 %v349, 0.0
    %v353 = vmul.f32 %v352, 1.442695
    %v354 = vpow.pop %v353
    %v355 = vsub.f32 %v354, 1.0
    %v356 = vsel %vm351, %v349, %v355
    %v357 = vld [vmem:[#allocation7] sm:$0xff]
    %v358 = vld [vmem:[#allocation7 + $0x8] sm:$0xff]
    %v359 = vld [vmem:[#allocation7 + $0x10] sm:$0xff]
    %v360 = vld [vmem:[#allocation7 + $0x18] sm:$0xff]
    %v361 = vld [vmem:[#allocation7 + $0x20] sm:$0xff]
    %v362 = vld [vmem:[#allocation7 + $0x28] sm:$0xff]
    %v363 = vld [vmem:[#allocation7 + $0x30] sm:$0xff]
    %v364 = vld [vmem:[#allocation7 + $0x38] sm:$0xff]
    %v365 = vld [vmem:[#allocation7 + $0x40] sm:$0xff]
    %v366 = vld [vmem:[#allocation7 + $0x48] sm:$0xff]
    %v367 = vld [vmem:[#allocation7 + $0x50] sm:$0xff]
    %v368 = vld [vmem:[#allocation7 + $0x58] sm:$0xff]
    %v369 = vld [vmem:[#allocation7 + $0x60] sm:$0xff]
    %v370 = vld [vmem:[#allocation7 + $0x68] sm:$0xff]
    %v371 = vld [vmem:[#allocation7 + $0x70] sm:$0xff]
    %v372 = vld [vmem:[#allocation7 + $0x78] sm:$0xff]
    %v373 = vld [vmem:[%s4] sm:$0x1]
    %v375 = vperm.slane %v373, 0
    %377 = vmatpush.msra.mxu0 %v372
    %378 = vmatpush.msra.mxu0 %v371
    %379 = vmatpush.msra.mxu0 %v370
    %380 = vmatpush.msra.mxu0 %v369
    %381 = vmatpush.msra.mxu0 %v368
    %382 = vmatpush.msra.mxu0 %v367
    %383 = vmatpush.msra.mxu0 %v366
    %384 = vmatpush.msra.mxu0 %v365
    %385 = vmatpush.msra.mxu0 %v364
    %386 = vmatpush.msra.mxu0 %v363
    %387 = vmatpush.msra.mxu0 %v362
    %388 = vmatpush.msra.mxu0 %v361
    %389 = vmatpush.msra.mxu0 %v360
    %390 = vmatpush.msra.mxu0 %v359
    %391 = vmatpush.msra.mxu0 %v358
    %392 = vmatpush.msra.mxu0 %v357
    %393 = vmatmul.f32.gmra.mxu0 %v356
    %v394 = vpop.f32.mrf.mxu0
    %v395 = vadd.f32 %v375, %v394
    %396 = vdwg.mxu0
    %v397 = vtanh.pop %v395
    %v398 = vld [vmem:[#allocation8] sm:$0xff]
    %v399 = vld [vmem:[#allocation8 + $0x8] sm:$0xff]
    %v400 = vld [vmem:[#allocation8 + $0x10] sm:$0xff]
    %v401 = vld [vmem:[#allocation8 + $0x18] sm:$0xff]
    %v402 = vld [vmem:[#allocation8 + $0x20] sm:$0xff]
    %v403 = vld [vmem:[#allocation8 + $0x28] sm:$0xff]
    %v404 = vld [vmem:[#allocation8 + $0x30] sm:$0xff]
    %v405 = vld [vmem:[#allocation8 + $0x38] sm:$0xff]
    %v406 = vld [vmem:[#allocation8 + $0x40] sm:$0xff]
    %v407 = vld [vmem:[#allocation8 + $0x48] sm:$0xff]
    %v408 = vld [vmem:[#allocation8 + $0x50] sm:$0xff]
    %v409 = vld [vmem:[#allocation8 + $0x58] sm:$0xff]
    %v410 = vld [vmem:[#allocation8 + $0x60] sm:$0xff]
    %v411 = vld [vmem:[#allocation8 + $0x68] sm:$0xff]
    %v412 = vld [vmem:[#allocation8 + $0x70] sm:$0xff]
    %v413 = vld [vmem:[#allocation8 + $0x78] sm:$0xff]
    %v414 = vld [vmem:[%s6] sm:$0x1]
    %v416 = vperm.slane %v414, 0
    %418 = vmatpush.msra.mxu0 %v413
    %419 = vmatpush.msra.mxu0 %v412
    %420 = vmatpush.msra.mxu0 %v411
    %421 = vmatpush.msra.mxu0 %v410
    %422 = vmatpush.msra.mxu0 %v409
    %423 = vmatpush.msra.mxu0 %v408
    %424 = vmatpush.msra.mxu0 %v407
    %425 = vmatpush.msra.mxu0 %v406
    %426 = vmatpush.msra.mxu0 %v405
    %427 = vmatpush.msra.mxu0 %v404
    %428 = vmatpush.msra.mxu0 %v403
    %429 = vmatpush.msra.mxu0 %v402
    %430 = vmatpush.msra.mxu0 %v401
    %431 = vmatpush.msra.mxu0 %v400
    %432 = vmatpush.msra.mxu0 %v399
    %433 = vmatpush.msra.mxu0 %v398
    %434 = vmatmul.f32.gmra.mxu0 %v397
    %v435 = vpop.f32.mrf.mxu0
    %v436 = vadd.f32 %v416, %v435
    %437 = vdwg.mxu0
    %v438 = vlaneseq
    %v439 = vand.u32 %v438, 127
    %vm440 = vcmp.lt.s32.totalorder %v439, 2
    %v441 = vmax.f32 %v436, 0.0
    %vm442 = vcmp.ne.f32.partialorder %v436, %v436
    %v443 = vadd.f32 %v436, 0.0
    %v444 = vand.u32 2147483647, %v436
    %v445 = vsub.f32 0.0, %v444
    %v446 = vmul.f32 %v445, 1.442695
    %v447 = vpow.pop %v446
    %v448 = vadd.f32 %v447, 1.0
    %v449 = vlog2.pop %v448
    %v450 = vmul.f32 %v449, 0.6931472
    %v451 = vmul.f32 -0.5, %v447
    %v452 = vadd.f32 %v451, 1.0
    %v453 = vmul.f32 %v452, %v447
    %v454 = vand.u32 2147483647, %v447
    %vm455 = vcmp.lt.f32.partialorder %v454, 0.0004427343
    %v456 = vsel %vm455, %v453, %v450
    %v457 = vadd.f32 %v441, %v456
    %v458 = vsel %vm442, %v443, %v457
    %v459 = vadd.f32 %v458, 1e-06
    %v460 = vsel %vm440, %v436, %v459
    %461 = vst [vmem:[#allocation10] sm:$0xff] %v460
    // Predicated region
    $region46: #{tpu_custom_call.1} parent=1 // pred_check
      _
    $region47: #{tpu_custom_call.1} parent=1 // pred_check_branch
      %463 = sbr.rel (0) target = $region49
    $region48: #{tpu_custom_call.1} parent=1 // pred_region
      %465 = vsyncadd [#allocation4], 0
      %s467 = sshll.u32 [#allocation10], 4
      %s468 = int_to_ptr.vmem [resolvable:$true] %s467
      %s469 = sshll.u32 %s7, 4
      %s470 = int_to_ptr.hbm [resolvable:$true] %s469
      %472 = dma.vmem_to_hbm [thread:$0]  %s468, 128, %s470, [#allocation4]
    $region49: #{tpu_custom_call.1} parent=1 // pred_fallthru
      _
    // Predicated region
    $region50: #{tpu_custom_call.1} parent=1 // pred_check
      _
    $region51: #{tpu_custom_call.1} parent=1 // pred_check_branch
      %474 = sbr.rel (0) target = $region53
    $region52: #{tpu_custom_call.1} parent=1 // pred_region
      %476 = dma.done [#allocation4], 128
    $region53: #{tpu_custom_call.1} parent=1 // pred_fallthru
      _
    %477 = vsyncpa [#allocation3], 1
    %478 = vsyncpa [#allocation6], 1
    %479 = vsyncpa [#allocation9], 1
    %480 = vsyncpa [#allocation4], 1

</llo_original>
